<compile_context>
chip_gen: v7x
topology: tpu7x:2x2x1
jax: 0.10.0
libtpu: 0.0.40
codegen_flags: <defaults>
</compile_context>

<pallas_src>
import jax
import jax.numpy as jnp
from jax.experimental import pallas as pl
from jax.experimental.pallas import tpu as pltpu


# ------------------------------- kernel -------------------------------------

def toy_mlp_kernel(xT_ref, w1_ref, b1_ref, w2_ref, b2_ref, oT_ref):
    # Transposed, lane-dense layout (batch on the 128-lane axis):
    #   xT_ref: [10, TB]   w1_ref: [10, 10]  (PyTorch [out, in])
    #   b1_ref: [10, 1]    w2_ref: [5, 10]   b2_ref: [5, 1]
    #   oT_ref: [5, TB]
    # h^T = relu(W1 @ x^T + b1);  y^T = W2 @ h^T + b2.  f32 accumulation.
    h = jnp.dot(w1_ref[...], xT_ref[...], preferred_element_type=jnp.float32)
    h = jnp.maximum(h + b1_ref[...], 0.0)                       # bias + ReLU (f32, VPU)
    y = jnp.dot(w2_ref[...], h, preferred_element_type=jnp.float32) + b2_ref[...]
    oT_ref[...] = y.astype(oT_ref.dtype)


# --------------------------- tile-size selection -----------------------------

_LANE = 128
_TB_MAX = 32 * 1024        # ~32K lanes: (10+5) f32 rows, double-buffered ~= 3.8 MiB VMEM
_SPLIT_THRESHOLD = 4096    # only bother splitting across tiles/TCs above this batch


def _round_up(x, m):
    return ((x + m - 1) // m) * m


def _choose_batch_tile(batch):
    """Lane-aligned batch tile: as large as possible (amortize per-step
    overhead on a bandwidth-bound op), capped at _TB_MAX, with an even tile
    count for large batches so v7x's two TensorCores both get work."""
    b128 = _round_up(batch, _LANE)
    if b128 <= _SPLIT_THRESHOLD:
        return min(b128, _TB_MAX)
    n = max(2, -(-b128 // _TB_MAX))
    if n % 2:
        n += 1                      # even tile count -> balanced across 2 TCs (v7x)
    return _round_up(-(-b128 // n), _LANE)


# ------------------------------- wrappers ------------------------------------

def toy_model_forward_transposed(xT, w1, b1, w2, b2, *, tb=None):
    """Transposed-I/O convention: xT is [10, B], returns [5, B] (f32).

    Preferred entry point when the caller can produce/consume feature-major
    data: it avoids the wrapper relayout passes of `toy_model_forward`.
    """
    d_in, B = xT.shape
    d_hid = w1.shape[0]
    d_out = w2.shape[0]

    if tb is None:
        tb = _choose_batch_tile(B)
    n_tiles = pl.cdiv(B, tb)

    b1_c = b1.reshape(d_hid, 1)
    b2_c = b2.reshape(d_out, 1)

    flops = 2 * B * d_in * d_hid + 2 * B * d_hid * d_out
    bytes_accessed = int(
        xT.dtype.itemsize * B * d_in        # x stream
        + 4 * B * d_out                     # output stream
        + 4 * (d_hid * d_in + d_hid + d_out * d_hid + d_out)  # weights/biases
    )

    out_T = pl.pallas_call(
        toy_mlp_kernel,
        out_shape=jax.ShapeDtypeStruct((d_out, B), jnp.float32),
        grid=(n_tiles,),
        in_specs=[
            # x^T batch tile, lane-dense; ragged last tile handled by Pallas.
            pl.BlockSpec((d_in, tb), lambda i: (0, i)),
            pl.BlockSpec((d_hid, d_in), lambda i: (0, 0)),   # W1, VMEM-resident
            pl.BlockSpec((d_hid, 1), lambda i: (0, 0)),      # b1
            pl.BlockSpec((d_out, d_hid), lambda i: (0, 0)),  # W2, VMEM-resident
            pl.BlockSpec((d_out, 1), lambda i: (0, 0)),      # b2
        ],
        out_specs=pl.BlockSpec((d_out, tb), lambda i: (0, i)),  # lane-dense stores
        compiler_params=pltpu.CompilerParams(
            dimension_semantics=("parallel",),               # shard batch across TCs (v7x)
        ),
        cost_estimate=pl.CostEstimate(
            flops=flops, transcendentals=0, bytes_accessed=bytes_accessed
        ),
    )(xT, w1, b1_c, w2, b2_c)

    return out_T


def toy_model_forward(x, w1, b1, w2, b2, *, tb=None, stream_dtype=None):
    """Fused Linear(10,10) -> ReLU -> Linear(10,5), PyTorch semantics.

    x:  [B, 10] f32
    w1: [10, 10] (PyTorch [out_features, in_features]),  b1: [10]
    w2: [5, 10],                                          b2: [5]
    returns [B, 5] f32

    stream_dtype=jnp.bfloat16 halves the dominant x HBM stream (accumulation
    stays f32 in-kernel); leave None for exact f32 semantics.
    """
    xT = x.T                                   # single relayout pass (no pad pass)
    if stream_dtype is not None and xT.dtype != stream_dtype:
        xT = xT.astype(stream_dtype)
    out_T = toy_model_forward_transposed(xT, w1, b1, w2, b2, tb=tb)
    return out_T.T                             # back to [B, 5]


def reference_forward(x, w1, b1, w2, b2):
    # Exact PyTorch convention: y = relu(x @ W1.T + b1) @ W2.T + b2
    h = jnp.maximum(x @ w1.T + b1, 0.0)
    return h @ w2.T + b2


# --------------------------------- demo --------------------------------------

if __name__ == "__main__":
    key = jax.random.PRNGKey(0)
    k_x, k_w1, k_b1, k_w2, k_b2 = jax.random.split(key, 5)

    # Small batch; 200 is not a multiple of 128, so it exercises the masked
    # ragged-tile path.  Feature sizes are fixed by the module (10 -> 10 -> 5).
    B = 200

    x = jax.random.normal(k_x, (B, 10), dtype=jnp.float32)

    # Parameters in PyTorch nn.Linear layout [out_features, in_features],
    # init mimicking U(-1/sqrt(fan_in), 1/sqrt(fan_in)).
    bound = 1.0 / jnp.sqrt(10.0)
    w1 = jax.random.uniform(k_w1, (10, 10), jnp.float32, -bound, bound)
    b1 = jax.random.uniform(k_b1, (10,), jnp.float32, -bound, bound)
    w2 = jax.random.uniform(k_w2, (5, 10), jnp.float32, -bound, bound)
    b2 = jax.random.uniform(k_b2, (5,), jnp.float32, -bound, bound)

    ref = reference_forward(x, w1, b1, w2, b2)

    # 1) Default path: auto tile (whole batch in one lane-dense tile), f32 exact.
    out = jax.block_until_ready(toy_model_forward(x, w1, b1, w2, b2))
    assert out.shape == (B, 5), out.shape
    assert jnp.allclose(out, ref, atol=1e-5, rtol=1e-5), "f32 mismatch vs reference"

    # 2) Forced small tile: exercises the multi-tile grid + masked ragged last tile.
    out_tiled = jax.block_until_ready(toy_model_forward(x, w1, b1, w2, b2, tb=128))
    assert jnp.allclose(out_tiled, ref, atol=1e-5, rtol=1e-5), "tiled f32 mismatch"

    # 3) bf16 input streaming (bandwidth optimization); looser tolerance by design.
    out_bf16 = jax.block_until_ready(
        toy_model_forward(x, w1, b1, w2, b2, stream_dtype=jnp.bfloat16))
    assert jnp.allclose(out_bf16, ref, atol=1e-1, rtol=1e-2), "bf16 mismatch"

    print("KERNEL_OK")
</pallas_src>

<mosaic_0001>
module attributes {stable_mosaic.version = 11 : i64} {
  func.func @toy_mlp_kernel(%arg0: i32, %arg1: memref<10x256xf32, #tpu.memory_space<vmem>>, %arg2: memref<10x10xf32, #tpu.memory_space<vmem>>, %arg3: memref<10x1xf32, #tpu.memory_space<vmem>>, %arg4: memref<5x10xf32, #tpu.memory_space<vmem>>, %arg5: memref<5x1xf32, #tpu.memory_space<vmem>>, %arg6: memref<5x256xf32, #tpu.memory_space<vmem>>) attributes {dimension_semantics = [#tpu.dimension_semantics<parallel>], iteration_bounds = array<i64: 1>, scalar_prefetch = 0 : i64, scratch_operands = 0 : i64, tpu.core_type = #tpu.core_type<tc>, window_params = [{transform_indices = @transform_0, window_bounds = array<i64: 10, 256>}, {pipeline_mode = #tpu.pipeline_mode<synchronous>, transform_indices = @transform_1, window_bounds = array<i64: 10, 10>}, {pipeline_mode = #tpu.pipeline_mode<synchronous>, transform_indices = @transform_2, window_bounds = array<i64: 10, 1>}, {pipeline_mode = #tpu.pipeline_mode<synchronous>, transform_indices = @transform_3, window_bounds = array<i64: 5, 10>}, {pipeline_mode = #tpu.pipeline_mode<synchronous>, transform_indices = @transform_4, window_bounds = array<i64: 5, 1>}, {transform_indices = @transform_5, window_bounds = array<i64: 5, 256>}]} {
    %c0 = arith.constant 0 : index
    %c0_0 = arith.constant 0 : index
    %0 = vector.load %arg2[%c0, %c0_0] : memref<10x10xf32, #tpu.memory_space<vmem>>, vector<10x10xf32>
    %c0_1 = arith.constant 0 : index
    %c0_2 = arith.constant 0 : index
    %1 = vector.load %arg1[%c0_1, %c0_2] : memref<10x256xf32, #tpu.memory_space<vmem>>, vector<10x256xf32>
    %cst = arith.constant dense<0.000000e+00> : vector<10x256xf32>
    %2 = tpu.matmul %0, %1, %cst {dimension_numbers = #tpu.dot_dimension_numbers<[1], [0], [0], [1], [0, 0, 1, 1], [], []>} : vector<10x10xf32>, vector<10x256xf32>, vector<10x256xf32> -> vector<10x256xf32>
    %c0_3 = arith.constant 0 : index
    %c0_4 = arith.constant 0 : index
    %3 = vector.load %arg3[%c0_3, %c0_4] : memref<10x1xf32, #tpu.memory_space<vmem>>, vector<10x1xf32>
    %4 = vector.broadcast %3 : vector<10x1xf32> to vector<10x256xf32>
    %5 = arith.addf %2, %4 : vector<10x256xf32>
    %cst_5 = arith.constant 0.000000e+00 : f32
    %6 = vector.broadcast %cst_5 : f32 to vector<10x256xf32>
    %7 = arith.maximumf %5, %6 : vector<10x256xf32>
    %c0_6 = arith.constant 0 : index
    %c0_7 = arith.constant 0 : index
    %8 = vector.load %arg4[%c0_6, %c0_7] : memref<5x10xf32, #tpu.memory_space<vmem>>, vector<5x10xf32>
    %cst_8 = arith.constant dense<0.000000e+00> : vector<5x256xf32>
    %9 = tpu.matmul %8, %7, %cst_8 {dimension_numbers = #tpu.dot_dimension_numbers<[1], [0], [0], [1], [0, 0, 1, 1], [], []>} : vector<5x10xf32>, vector<10x256xf32>, vector<5x256xf32> -> vector<5x256xf32>
    %c0_9 = arith.constant 0 : index
    %c0_10 = arith.constant 0 : index
    %10 = vector.load %arg5[%c0_9, %c0_10] : memref<5x1xf32, #tpu.memory_space<vmem>>, vector<5x1xf32>
    %11 = vector.broadcast %10 : vector<5x1xf32> to vector<5x256xf32>
    %12 = arith.addf %9, %11 : vector<5x256xf32>
    %c0_11 = arith.constant 0 : index
    %c0_12 = arith.constant 0 : index
    %13 = vector.load %arg6[%c0_11, %c0_12] : memref<5x256xf32, #tpu.memory_space<vmem>>, vector<5x256xf32>
    tpu.vector_store %arg6[%c0_11, %c0_12], %12 {strides = array<i32>} : memref<5x256xf32, #tpu.memory_space<vmem>>, vector<5x256xf32>,
    return
  }
  func.func @transform_0(%arg0: i32) -> (i32, i32) {
    %c0_i32 = arith.constant 0 : i32
    %c0_i32_0 = arith.constant 0 : i32
    return %c0_i32, %arg0 : i32, i32
  }
  func.func @transform_1(%arg0: i32) -> (i32, i32) {
    %c0_i32 = arith.constant 0 : i32
    %c0_i32_0 = arith.constant 0 : i32
    %c0_i32_1 = arith.constant 0 : i32
    return %c0_i32, %c0_i32_0 : i32, i32
  }
  func.func @transform_2(%arg0: i32) -> (i32, i32) {
    %c0_i32 = arith.constant 0 : i32
    %c0_i32_0 = arith.constant 0 : i32
    %c0_i32_1 = arith.constant 0 : i32
    return %c0_i32, %c0_i32_0 : i32, i32
  }
  func.func @transform_3(%arg0: i32) -> (i32, i32) {
    %c0_i32 = arith.constant 0 : i32
    %c0_i32_0 = arith.constant 0 : i32
    %c0_i32_1 = arith.constant 0 : i32
    return %c0_i32, %c0_i32_0 : i32, i32
  }
  func.func @transform_4(%arg0: i32) -> (i32, i32) {
    %c0_i32 = arith.constant 0 : i32
    %c0_i32_0 = arith.constant 0 : i32
    %c0_i32_1 = arith.constant 0 : i32
    return %c0_i32, %c0_i32_0 : i32, i32
  }
  func.func @transform_5(%arg0: i32) -> (i32, i32) {
    %c0_i32 = arith.constant 0 : i32
    %c0_i32_0 = arith.constant 0 : i32
    return %c0_i32, %arg0 : i32, i32
  }
}

</mosaic_0001>

<llo_original>
// kernel: tpu_custom_call.1
$region0: #{tpu_custom_call.1}
  #allocation0 [shape = 'u32[]', space=smem, size = 0x4, offset = 0x4, fixed_abs, tag = 'smem constant byte address 0x4 - core index']
  #allocation1 [shape = 'u32[144,128]{1,0:T(1,128)}', space=vmem, size = 0x12000, scoped, tag = 'internal scratch']
  %s0 = inlined_call_operand.hbm [shape: f32[10,200], index: 0, kind: input, shape index: {}]
  %s1 = inlined_call_operand.vmem [shape: f32[10,10], index: 1, kind: input, shape index: {}]
  %s2 = inlined_call_operand.vmem [shape: f32[10,1], index: 2, kind: input, shape index: {}]
  %s3 = inlined_call_operand.vmem [shape: f32[5,10], index: 3, kind: input, shape index: {}]
  %s4 = inlined_call_operand.vmem [shape: f32[5,1], index: 4, kind: input, shape index: {}]
  %s5 = inlined_call_operand.hbm [shape: f32[5,200], index: 5, kind: output, shape index: {}]
  %s6 = sld [smem:[#allocation0]]
  $region34: #{tpu_custom_call.1} parent=0
    _
  %s8 = ssub.s32 1, %s6
  %s9 = scalar_select 0, %s8, %s6
  $region1: #{tpu_custom_call.1} parent=0
    #allocation2 [shape = 'u8[16384]{0}', space=vmem, size = 0x4000, scoped, tag = 'input window, operand 0, single buffered']
    #allocation3 [shape = 's32[1]{0}', space=sflag, size = 0x4, scoped, tag = 'scoped memory for tpu_custom_call.1']
    #allocation4 [shape = 's32[1]{0}', space=sflag, size = 0x4, scoped, tag = 'scoped memory for tpu_custom_call.1']
    #allocation5 [shape = 'u8[8192]{0}', space=vmem, size = 0x2000, scoped, tag = 'output window, operand 0, single buffered']
    %10 = vsyncpa [#allocation3], 0
    %11 = vsyncpa [#allocation4], 0
    // Predicated region
    $region2: #{tpu_custom_call.1} parent=1 // pred_check
      _
    $region3: #{tpu_custom_call.1} parent=1 // pred_check_branch
      %13 = sbr.rel (0) target = $region5
    $region4: #{tpu_custom_call.1} parent=1 // pred_region
      %s15 = ssub.s32 512, 512
      %16 = vsyncadd [#allocation3], %s15
      %s17 = sshll.u32 [#allocation2], 4
      %s18 = int_to_ptr.vmem [resolvable:$true] %s17
      %23 = dma.hbm_to_vmem [thread:$0]  %s0, 512, %s18, [#allocation3], 256, 256, 16
    $region5: #{tpu_custom_call.1} parent=1 // pred_fallthru
      _
    // Predicated region
    $region6: #{tpu_custom_call.1} parent=1 // pred_check
      _
    $region7: #{tpu_custom_call.1} parent=1 // pred_check_branch
      %25 = sbr.rel (0) target = $region9
    $region8: #{tpu_custom_call.1} parent=1 // pred_region
      _
    $region9: #{tpu_custom_call.1} parent=1 // pred_fallthru
      _
    // Predicated region
    $region10: #{tpu_custom_call.1} parent=1 // pred_check
      _
    $region11: #{tpu_custom_call.1} parent=1 // pred_check_branch
      %27 = sbr.rel (0) target = $region13
    $region12: #{tpu_custom_call.1} parent=1 // pred_region
      _
    $region13: #{tpu_custom_call.1} parent=1 // pred_fallthru
      _
    // Predicated region
    $region14: #{tpu_custom_call.1} parent=1 // pred_check
      _
    $region15: #{tpu_custom_call.1} parent=1 // pred_check_branch
      %29 = sbr.rel (0) target = $region17
    $region16: #{tpu_custom_call.1} parent=1 // pred_region
      _
    $region17: #{tpu_custom_call.1} parent=1 // pred_fallthru
      _
    // Predicated region
    $region18: #{tpu_custom_call.1} parent=1 // pred_check
      _
    $region19: #{tpu_custom_call.1} parent=1 // pred_check_branch
      %31 = sbr.rel (0) target = $region21
    $region20: #{tpu_custom_call.1} parent=1 // pred_region
      _
    $region21: #{tpu_custom_call.1} parent=1 // pred_fallthru
      _
    // Predicated region
    $region22: #{tpu_custom_call.1} parent=1 // pred_check
      _
    $region23: #{tpu_custom_call.1} parent=1 // pred_check_branch
      %33 = sbr.rel (0) target = $region25
    $region24: #{tpu_custom_call.1} parent=1 // pred_region
      %34 = dma.done [#allocation3], 512
    $region25: #{tpu_custom_call.1} parent=1 // pred_fallthru
      _
    %v35 = vld [vmem:[%s1] sm:$0xff]
    %v36 = vld [vmem:[%s1 + $0x8] sm:$0x3]
    %v37 = vld [vmem:[#allocation2] sm:$0xff]
    %v38 = vld [vmem:[#allocation2 + $0x8] sm:$0xff]
    %v39 = vld [vmem:[#allocation2 + $0x10] sm:$0x3]
    %v40 = vld [vmem:[#allocation2 + $0x18] sm:$0x3]
    %v41 = vld [vmem:[%s2] sm:$0xff]
    %v42 = vld [vmem:[%s2 + $0x8] sm:$0x3]
    %44 = vset.pattern.permute.xlu0 0
    %45 = vperm.xlu0 %44, %v41
    %v46 = vpop.permute.xlu0 %45
    %49 = vset.pattern.permute.xlu0 0
    %50 = vperm.xlu0 %49, %v42
    %v51 = vpop.permute.xlu0 %50
    %vm53 = vcmask 80896
    %v55 = vsel %vm53, %v35, 0
    %v58 = vsel %vm53, %v36, 0
    %vm60 = vcmask 1041408
    %v62 = vsel %vm60, %v39, 0
    %v65 = vsel %vm60, %v40, 0
    %67 = vmatprep.subr.mxu0 %v38
    %68 = vmatpush1.msra.mxu0 %v37
    %69 = vmatprep.subr.mxu0 %v65
    %70 = vmatpush1.msra.mxu0 %v62
    %71 = vmatprep.subr.mxu0 0.0
    %72 = vmatpush1.msra.mxu0 0.0
    %73 = vmatprep.subr.mxu0 0.0
    %74 = vmatpush1.msra.mxu0 0.0
    %75 = vmatprep.subr.mxu0 0.0
    %76 = vmatpush1.msra.mxu0 0.0
    %77 = vmatprep.subr.mxu0 0.0
    %78 = vmatpush1.msra.mxu0 0.0
    %79 = vmatprep.subr.mxu0 0.0
    %80 = vmatpush1.msra.mxu0 0.0
    %81 = vmatprep.subr.mxu0 0.0
    %82 = vmatpush1.msra.mxu0 0.0
    %83 = vmatprep.subr.mxu0 0.0
    %84 = vmatpush1.msra.mxu0 0.0
    %85 = vmatprep.subr.mxu0 0.0
    %86 = vmatpush1.msra.mxu0 0.0
    %87 = vmatprep.subr.mxu0 0.0
    %88 = vmatpush1.msra.mxu0 0.0
    %89 = vmatprep.subr.mxu0 0.0
    %90 = vmatpush1.msra.mxu0 0.0
    %91 = vmatprep.subr.mxu0 0.0
    %92 = vmatpush1.msra.mxu0 0.0
    %93 = vmatprep.subr.mxu0 0.0
    %94 = vmatpush1.msra.mxu0 0.0
    %95 = vmatprep.subr.mxu0 0.0
    %96 = vmatpush1.msra.mxu0 0.0
    %97 = vmatprep.subr.mxu0 0.0
    %98 = vmatpush1.msra.mxu0 0.0
    %99 = vmatprep.subr.mxu0 0.0
    %100 = vmatpush1.msra.mxu0 0.0
    %101 = vmatprep.subr.mxu0 0.0
    %102 = vmatpush1.msra.mxu0 0.0
    %103 = vmatprep.subr.mxu0 0.0
    %104 = vmatpush1.msra.mxu0 0.0
    %105 = vmatprep.subr.mxu0 0.0
    %106 = vmatpush1.msra.mxu0 0.0
    %107 = vmatprep.subr.mxu0 0.0
    %108 = vmatpush1.msra.mxu0 0.0
    %109 = vmatprep.subr.mxu0 0.0
    %110 = vmatpush1.msra.mxu0 0.0
    %111 = vmatprep.subr.mxu0 0.0
    %112 = vmatpush1.msra.mxu0 0.0
    %113 = vmatprep.subr.mxu0 0.0
    %114 = vmatpush1.msra.mxu0 0.0
    %115 = vmatprep.subr.mxu0 0.0
    %116 = vmatpush1.msra.mxu0 0.0
    %117 = vmatprep.subr.mxu0 0.0
    %118 = vmatpush1.msra.mxu0 0.0
    %119 = vmatprep.subr.mxu0 0.0
    %120 = vmatpush1.msra.mxu0 0.0
    %121 = vmatprep.subr.mxu0 0.0
    %122 = vmatpush1.msra.mxu0 0.0
    %123 = vmatprep.subr.mxu0 0.0
    %124 = vmatpush1.msra.mxu0 0.0
    %125 = vmatprep.subr.mxu0 0.0
    %126 = vmatpush1.msra.mxu0 0.0
    %127 = vmatprep.subr.mxu0 0.0
    %128 = vmatpush1.msra.mxu0 0.0
    %129 = vmatprep.subr.mxu0 0.0
    %130 = vmatpush1.msra.mxu0 0.0
    %131 = vmatprep.mubr.f32.mxu0 0.0
    %132 = vmatmul.mubr.f32.gmra.mrb[0].mxu0 %v55
    %v133 = vpop.f32.mrb[0].mxu0
    %v134 = vadd.f32 %v46, %v133
    %v135 = vpop.f32.mrb[0].mxu0
    %v136 = vadd.f32 %v46, %v135
    %137 = vmatprep.mubr.f32.mxu0 0.0
    %138 = vmatmul.mubr.f32.gmra.mrb[0].mxu0 %v58
    %v139 = vpop.f32.mrb[0].mxu0
    %v140 = vadd.f32 %v51, %v139
    %v141 = vpop.f32.mrb[0].mxu0
    %v142 = vadd.f32 %v51, %v141
    %143 = vdwg.mxu0
    %v144 = vmax.f32 %v134, 0.0
    %v145 = vmax.f32 %v136, 0.0
    %v146 = vmax.f32 %v140, 0.0
    %v147 = vmax.f32 %v142, 0.0
    %v148 = vld [vmem:[%s3] sm:$0x1f]
    %v149 = vld [vmem:[%s4] sm:$0x1f]
    %151 = vset.pattern.permute.xlu0 0
    %152 = vperm.xlu0 %151, %v149
    %v153 = vpop.permute.xlu0 %152
    %v156 = vsel %vm53, %v148, 0
    %v159 = vsel %vm60, %v146, 0
    %v162 = vsel %vm60, %v147, 0
    %164 = vmatprep.subr.mxu0 %v145
    %165 = vmatpush1.msra.mxu0 %v144
    %166 = vmatprep.subr.mxu0 %v162
    %167 = vmatpush1.msra.mxu0 %v159
    %168 = vmatprep.subr.mxu0 0.0
    %169 = vmatpush1.msra.mxu0 0.0
    %170 = vmatprep.subr.mxu0 0.0
    %171 = vmatpush1.msra.mxu0 0.0
    %172 = vmatprep.subr.mxu0 0.0
    %173 = vmatpush1.msra.mxu0 0.0
    %174 = vmatprep.subr.mxu0 0.0
    %175 = vmatpush1.msra.mxu0 0.0
    %176 = vmatprep.subr.mxu0 0.0
    %177 = vmatpush1.msra.mxu0 0.0
    %178 = vmatprep.subr.mxu0 0.0
    %179 = vmatpush1.msra.mxu0 0.0
    %180 = vmatprep.subr.mxu0 0.0
    %181 = vmatpush1.msra.mxu0 0.0
    %182 = vmatprep.subr.mxu0 0.0
    %183 = vmatpush1.msra.mxu0 0.0
    %184 = vmatprep.subr.mxu0 0.0
    %185 = vmatpush1.msra.mxu0 0.0
    %186 = vmatprep.subr.mxu0 0.0
    %187 = vmatpush1.msra.mxu0 0.0
    %188 = vmatprep.subr.mxu0 0.0
    %189 = vmatpush1.msra.mxu0 0.0
    %190 = vmatprep.subr.mxu0 0.0
    %191 = vmatpush1.msra.mxu0 0.0
    %192 = vmatprep.subr.mxu0 0.0
    %193 = vmatpush1.msra.mxu0 0.0
    %194 = vmatprep.subr.mxu0 0.0
    %195 = vmatpush1.msra.mxu0 0.0
    %196 = vmatprep.subr.mxu0 0.0
    %197 = vmatpush1.msra.mxu0 0.0
    %198 = vmatprep.subr.mxu0 0.0
    %199 = vmatpush1.msra.mxu0 0.0
    %200 = vmatprep.subr.mxu0 0.0
    %201 = vmatpush1.msra.mxu0 0.0
    %202 = vmatprep.subr.mxu0 0.0
    %203 = vmatpush1.msra.mxu0 0.0
    %204 = vmatprep.subr.mxu0 0.0
    %205 = vmatpush1.msra.mxu0 0.0
    %206 = vmatprep.subr.mxu0 0.0
    %207 = vmatpush1.msra.mxu0 0.0
    %208 = vmatprep.subr.mxu0 0.0
    %209 = vmatpush1.msra.mxu0 0.0
    %210 = vmatprep.subr.mxu0 0.0
    %211 = vmatpush1.msra.mxu0 0.0
    %212 = vmatprep.subr.mxu0 0.0
    %213 = vmatpush1.msra.mxu0 0.0
    %214 = vmatprep.subr.mxu0 0.0
    %215 = vmatpush1.msra.mxu0 0.0
    %216 = vmatprep.subr.mxu0 0.0
    %217 = vmatpush1.msra.mxu0 0.0
    %218 = vmatprep.subr.mxu0 0.0
    %219 = vmatpush1.msra.mxu0 0.0
    %220 = vmatprep.subr.mxu0 0.0
    %221 = vmatpush1.msra.mxu0 0.0
    %222 = vmatprep.subr.mxu0 0.0
    %223 = vmatpush1.msra.mxu0 0.0
    %224 = vmatprep.subr.mxu0 0.0
    %225 = vmatpush1.msra.mxu0 0.0
    %226 = vmatprep.subr.mxu0 0.0
    %227 = vmatpush1.msra.mxu0 0.0
    %228 = vmatprep.mubr.f32.mxu0 0.0
    %229 = vmatmul.mubr.f32.gmra.mrb[0].mxu0 %v156
    %v230 = vpop.f32.mrb[0].mxu0
    %v231 = vadd.f32 %v153, %v230
    %v232 = vpop.f32.mrb[0].mxu0
    %v233 = vadd.f32 %v153, %v232
    %234 = vdwg.mxu0
    %235 = vst [vmem:[#allocation5] sm:$0x1f] %v231
    %236 = vst [vmem:[#allocation5 + $0x8] sm:$0x1f] %v233
    // Predicated region
    $region26: #{tpu_custom_call.1} parent=1 // pred_check
      _
    $region27: #{tpu_custom_call.1} parent=1 // pred_check_branch
      %238 = sbr.rel (0) target = $region29
    $region28: #{tpu_custom_call.1} parent=1 // pred_region
      %s240 = ssub.s32 256, 256
      %241 = vsyncadd [#allocation4], %s240
      %s243 = sshll.u32 [#allocation5], 4
      %s244 = int_to_ptr.vmem [resolvable:$true] %s243
      %246 = dma.vmem_to_hbm [thread:$0]  %s244, 256, %s5, [#allocation4]
    $region29: #{tpu_custom_call.1} parent=1 // pred_fallthru
      _
    // Predicated region
    $region30: #{tpu_custom_call.1} parent=1 // pred_check
      _
    $region31: #{tpu_custom_call.1} parent=1 // pred_check_branch
      %248 = sbr.rel (0) target = $region33
    $region32: #{tpu_custom_call.1} parent=1 // pred_region
      %249 = dma.done [#allocation4], 256
    $region33: #{tpu_custom_call.1} parent=1 // pred_fallthru
      _
    %250 = vsyncpa [#allocation3], 1
    %251 = vsyncpa [#allocation4], 1

</llo_original>
